<compile_context>
chip_gen: v6e
topology: v6e:2x2x1
jax: 0.10.0
libtpu: 0.0.40
codegen_flags: <defaults>
</compile_context>

<pallas_src>
import functools

import jax
import jax.numpy as jnp
from jax.experimental import pallas as pl
from jax.experimental.pallas import tpu as pltpu


def ffn_kernel(x_ref, w1_ref, b1_ref, w2_ref, b2_ref, o_ref):
    """h = relu(x @ W1 + b1); o = h @ W2 + b2 (dropout == identity at eval)."""
    x = x_ref[...]                                            # (tb, Dp) matmul dtype
    h = jnp.dot(x, w1_ref[...], preferred_element_type=jnp.float32)
    h = jnp.maximum(h + b1_ref[...], 0.0)                     # bias + ReLU in f32 (VPU)
    h = h.astype(w2_ref.dtype)                                # back to MXU dtype
    o = jnp.dot(h, w2_ref[...], preferred_element_type=jnp.float32)
    o_ref[...] = (o + b2_ref[...]).astype(o_ref.dtype)


def _round_up(n, m):
    return ((n + m - 1) // m) * m


@functools.partial(
    jax.jit,
    static_argnames=("block_b", "matmul_dtype", "single_buffer_weights"),
)
def _ffn_padded(x, w1, b1, w2, b2, *, block_b, matmul_dtype, single_buffer_weights):
    """x:(B,D) -> (B,D) f32. Pads to lane-aligned shapes, runs fused kernel, slices back."""
    B, D = x.shape
    Dp = max(_round_up(D, 128), 128)                          # 200 -> 256 (lane-dense)
    Bp = _round_up(max(B, 8), block_b)

    def pad2(a, rows, cols, dtype):
        a = a.astype(dtype)
        return jnp.pad(a, ((0, rows - a.shape[0]), (0, cols - a.shape[1])))

    xp = pad2(x, Bp, Dp, matmul_dtype)
    w1p = pad2(w1, Dp, Dp, matmul_dtype)
    w2p = pad2(w2, Dp, Dp, matmul_dtype)
    b1p = pad2(b1.reshape(1, -1), 1, Dp, jnp.float32)
    b2p = pad2(b2.reshape(1, -1), 1, Dp, jnp.float32)

    grid = (Bp // block_b,)
    x_bytes = jnp.dtype(matmul_dtype).itemsize

    def w_spec(shape):
        # Grid-invariant operands: constant index_map -> one resident VMEM copy suffices.
        if single_buffer_weights:
            return pl.BlockSpec(shape, lambda i: (0, 0), pipeline_mode=pl.Buffered(1))
        return pl.BlockSpec(shape, lambda i: (0, 0))

    nbuf_w = 1 if single_buffer_weights else 2
    vmem_need = (2 * block_b * Dp * (x_bytes + 4)             # x tile + f32 out tile (dbl-buffered)
                 + nbuf_w * (2 * Dp * Dp * x_bytes)           # W1 + W2
                 + nbuf_w * (2 * Dp * 4))                     # b1 + b2 (f32)
    # Explicit limit (scoped default is only 16/32 MiB); stay under v7x's 64 MiB physical.
    vmem_limit = int(min(max(2 * vmem_need, 32 * 1024 * 1024), 56 * 1024 * 1024))

    cost = pl.CostEstimate(
        flops=4 * Bp * Dp * Dp,                               # two (Bp,Dp)x(Dp,Dp) matmuls
        transcendentals=0,
        bytes_accessed=(Bp * Dp * x_bytes + 2 * Dp * Dp * x_bytes
                        + 2 * Dp * 4 + Bp * Dp * 4),
    )

    out = pl.pallas_call(
        ffn_kernel,
        out_shape=jax.ShapeDtypeStruct((Bp, Dp), jnp.float32),
        grid_spec=pltpu.PrefetchScalarGridSpec(
            num_scalar_prefetch=0,
            grid=grid,
            in_specs=[
                pl.BlockSpec((block_b, Dp), lambda i: (i, 0)),   # x tile (pipelined)
                w_spec((Dp, Dp)),                                # W1 (resident)
                w_spec((1, Dp)),                                 # b1
                w_spec((Dp, Dp)),                                # W2 (resident)
                w_spec((1, Dp)),                                 # b2
            ],
            out_specs=pl.BlockSpec((block_b, Dp), lambda i: (i, 0)),
        ),
        compiler_params=pltpu.CompilerParams(
            dimension_semantics=("parallel",),                   # batch axis -> megacore
            vmem_limit_bytes=vmem_limit,
        ),
        cost_estimate=cost,
    )(xp, w1p, b1p, w2p, b2p)

    return out[:B, :D]


def ffn_forward(x, w1, b1, w2, b2, *, matmul_dtype=jnp.bfloat16, block_rows=None):
    """Forward pass of FFN.

    x: (..., D); w1, w2: (D, D) in [in, out] layout; b1, b2: (D,).
    Returns x.shape in x.dtype. Dropout is eval-mode identity.
    """
    orig_shape = x.shape
    D = orig_shape[-1]
    x2 = x.reshape(-1, D)
    B = x2.shape[0]
    out_dtype = x.dtype

    # Adaptive batch tile: single step for tiny B; >=2 parallel steps for mid B
    # (v7x has 2 TensorCores); 256-row tiles for large B (MXU stays fed, VMEM is easy).
    if block_rows is None:
        if B <= 128:
            block_rows = _round_up(max(B, 8), 8)
        elif B <= 512:
            block_rows = _round_up((B + 1) // 2, 8)
        else:
            block_rows = 256

    try:
        out = _ffn_padded(x2, w1, b1, w2, b2, block_b=block_rows,
                          matmul_dtype=matmul_dtype, single_buffer_weights=True)
    except Exception:
        # pl.Buffered(1) unsupported on this jax/TPU combo -> default double-buffering.
        out = _ffn_padded(x2, w1, b1, w2, b2, block_b=block_rows,
                          matmul_dtype=matmul_dtype, single_buffer_weights=False)

    return out.astype(out_dtype).reshape(orig_shape)


def ffn_reference(x, w1, b1, w2, b2):
    h = jnp.maximum(x @ w1 + b1.reshape(1, -1), 0.0)
    return h @ w2 + b2.reshape(1, -1)


if __name__ == "__main__":
    # Shapes consistent with the module: state_size=200 features, small batch of 8 rows.
    B, D = 8, 200
    key = jax.random.PRNGKey(0)
    kx, k1, k2, k3, k4 = jax.random.split(key, 5)

    # PyTorch Linear-style uniform init bound 1/sqrt(fan_in).
    bound = 1.0 / (D ** 0.5)
    x = jax.random.normal(kx, (B, D), dtype=jnp.float32)
    w1 = jax.random.uniform(k1, (D, D), minval=-bound, maxval=bound, dtype=jnp.float32)
    b1 = jax.random.uniform(k2, (D,), minval=-bound, maxval=bound, dtype=jnp.float32)
    w2 = jax.random.uniform(k3, (D, D), minval=-bound, maxval=bound, dtype=jnp.float32)
    b2 = jax.random.uniform(k4, (D,), minval=-bound, maxval=bound, dtype=jnp.float32)

    ref = ffn_reference(x, w1, b1, w2, b2)

    # f32 MXU path: exactness check against the f32 reference.
    out_f32 = jax.block_until_ready(
        ffn_forward(x, w1, b1, w2, b2, matmul_dtype=jnp.float32))
    assert out_f32.shape == (B, D)
    assert jnp.allclose(out_f32, ref, atol=5e-4, rtol=5e-4), "f32 path mismatch vs reference"

    # bf16 MXU path (perf-recommended on v6e/v7x): f32 accumulation, looser tolerance
    # since inputs/weights are rounded to bf16.
    out_bf16 = jax.block_until_ready(
        ffn_forward(x, w1, b1, w2, b2, matmul_dtype=jnp.bfloat16))
    assert out_bf16.shape == (B, D)
    assert jnp.allclose(out_bf16, ref, atol=5e-2, rtol=5e-2), "bf16 path mismatch vs reference"

    print("KERNEL_OK")
</pallas_src>

<mosaic_0001>
module attributes {stable_mosaic.version = 11 : i64} {
  func.func @ffn_kernel(%arg0: i32, %arg1: memref<8x256xf32, #tpu.memory_space<vmem>>, %arg2: memref<256x256xf32, #tpu.memory_space<vmem>>, %arg3: memref<1x256xf32, #tpu.memory_space<vmem>>, %arg4: memref<256x256xf32, #tpu.memory_space<vmem>>, %arg5: memref<1x256xf32, #tpu.memory_space<vmem>>, %arg6: memref<8x256xf32, #tpu.memory_space<vmem>>) attributes {dimension_semantics = [#tpu.dimension_semantics<parallel>], iteration_bounds = array<i64: 1>, scalar_prefetch = 0 : i64, scratch_operands = 0 : i64, tpu.core_type = #tpu.core_type<tc>, window_params = [{transform_indices = @transform_0, window_bounds = array<i64: 8, 256>}, {pipeline_mode = #tpu.pipeline_mode<synchronous>, transform_indices = @transform_1, window_bounds = array<i64: 256, 256>}, {pipeline_mode = #tpu.pipeline_mode<synchronous>, transform_indices = @transform_2, window_bounds = array<i64: 1, 256>}, {pipeline_mode = #tpu.pipeline_mode<synchronous>, transform_indices = @transform_3, window_bounds = array<i64: 256, 256>}, {pipeline_mode = #tpu.pipeline_mode<synchronous>, transform_indices = @transform_4, window_bounds = array<i64: 1, 256>}, {transform_indices = @transform_5, window_bounds = array<i64: 8, 256>}]} {
    %c0 = arith.constant 0 : index
    %c0_0 = arith.constant 0 : index
    %0 = vector.load %arg1[%c0, %c0_0] : memref<8x256xf32, #tpu.memory_space<vmem>>, vector<8x256xf32>
    %c0_1 = arith.constant 0 : index
    %c0_2 = arith.constant 0 : index
    %1 = vector.load %arg2[%c0_1, %c0_2] : memref<256x256xf32, #tpu.memory_space<vmem>>, vector<256x256xf32>
    %cst = arith.constant dense<0.000000e+00> : vector<8x256xf32>
    %2 = tpu.matmul %0, %1, %cst {dimension_numbers = #tpu.dot_dimension_numbers<[1], [0], [0], [1], [0, 0, 1, 1], [], []>} : vector<8x256xf32>, vector<256x256xf32>, vector<8x256xf32> -> vector<8x256xf32>
    %c0_3 = arith.constant 0 : index
    %c0_4 = arith.constant 0 : index
    %3 = vector.load %arg3[%c0_3, %c0_4] : memref<1x256xf32, #tpu.memory_space<vmem>>, vector<1x256xf32>
    %4 = vector.broadcast %3 : vector<1x256xf32> to vector<8x256xf32>
    %5 = arith.addf %2, %4 : vector<8x256xf32>
    %cst_5 = arith.constant 0.000000e+00 : f32
    %6 = vector.broadcast %cst_5 : f32 to vector<8x256xf32>
    %7 = arith.maximumf %5, %6 : vector<8x256xf32>
    %c0_6 = arith.constant 0 : index
    %c0_7 = arith.constant 0 : index
    %8 = vector.load %arg4[%c0_6, %c0_7] : memref<256x256xf32, #tpu.memory_space<vmem>>, vector<256x256xf32>
    %cst_8 = arith.constant dense<0.000000e+00> : vector<8x256xf32>
    %9 = tpu.matmul %7, %8, %cst_8 {dimension_numbers = #tpu.dot_dimension_numbers<[1], [0], [0], [1], [0, 0, 1, 1], [], []>} : vector<8x256xf32>, vector<256x256xf32>, vector<8x256xf32> -> vector<8x256xf32>
    %c0_9 = arith.constant 0 : index
    %c0_10 = arith.constant 0 : index
    %10 = vector.load %arg5[%c0_9, %c0_10] : memref<1x256xf32, #tpu.memory_space<vmem>>, vector<1x256xf32>
    %11 = vector.broadcast %10 : vector<1x256xf32> to vector<8x256xf32>
    %12 = arith.addf %9, %11 : vector<8x256xf32>
    %c0_11 = arith.constant 0 : index
    %c0_12 = arith.constant 0 : index
    %13 = vector.load %arg6[%c0_11, %c0_12] : memref<8x256xf32, #tpu.memory_space<vmem>>, vector<8x256xf32>
    tpu.vector_store %arg6[%c0_11, %c0_12], %12 {strides = array<i32>} : memref<8x256xf32, #tpu.memory_space<vmem>>, vector<8x256xf32>,
    return
  }
  func.func @transform_0(%arg0: i32) -> (i32, i32) {
    %c0_i32 = arith.constant 0 : i32
    %c0_i32_0 = arith.constant 0 : i32
    return %arg0, %c0_i32 : i32, i32
  }
  func.func @transform_1(%arg0: i32) -> (i32, i32) {
    %c0_i32 = arith.constant 0 : i32
    %c0_i32_0 = arith.constant 0 : i32
    %c0_i32_1 = arith.constant 0 : i32
    return %c0_i32, %c0_i32_0 : i32, i32
  }
  func.func @transform_2(%arg0: i32) -> (i32, i32) {
    %c0_i32 = arith.constant 0 : i32
    %c0_i32_0 = arith.constant 0 : i32
    %c0_i32_1 = arith.constant 0 : i32
    return %c0_i32, %c0_i32_0 : i32, i32
  }
  func.func @transform_3(%arg0: i32) -> (i32, i32) {
    %c0_i32 = arith.constant 0 : i32
    %c0_i32_0 = arith.constant 0 : i32
    %c0_i32_1 = arith.constant 0 : i32
    return %c0_i32, %c0_i32_0 : i32, i32
  }
  func.func @transform_4(%arg0: i32) -> (i32, i32) {
    %c0_i32 = arith.constant 0 : i32
    %c0_i32_0 = arith.constant 0 : i32
    %c0_i32_1 = arith.constant 0 : i32
    return %c0_i32, %c0_i32_0 : i32, i32
  }
  func.func @transform_5(%arg0: i32) -> (i32, i32) {
    %c0_i32 = arith.constant 0 : i32
    %c0_i32_0 = arith.constant 0 : i32
    return %arg0, %c0_i32 : i32, i32
  }
}

module attributes {stable_mosaic.version = 11 : i64} {
  func.func @ffn_kernel(%arg0: i32, %arg1: memref<8x256xf32, #tpu.memory_space<vmem>>, %arg2: memref<256x256xf32, #tpu.memory_space<vmem>>, %arg3: memref<1x256xf32, #tpu.memory_space<vmem>>, %arg4: memref<256x256xf32, #tpu.memory_space<vmem>>, %arg5: memref<1x256xf32, #tpu.memory_space<vmem>>, %arg6: memref<8x256xf32, #tpu.memory_space<vmem>>) attributes {dimension_semantics = [#tpu.dimension_semantics<parallel>], iteration_bounds = array<i64: 1>, scalar_prefetch = 0 : i64, scratch_operands = 0 : i64, tpu.core_type = #tpu.core_type<tc>, window_params = [{transform_indices = @transform_0, window_bounds = array<i64: 8, 256>}, {pipeline_mode = #tpu.pipeline_mode<synchronous>, transform_indices = @transform_1, window_bounds = array<i64: 256, 256>}, {pipeline_mode = #tpu.pipeline_mode<synchronous>, transform_indices = @transform_2, window_bounds = array<i64: 1, 256>}, {pipeline_mode = #tpu.pipeline_mode<synchronous>, transform_indices = @transform_3, window_bounds = array<i64: 256, 256>}, {pipeline_mode = #tpu.pipeline_mode<synchronous>, transform_indices = @transform_4, window_bounds = array<i64: 1, 256>}, {transform_indices = @transform_5, window_bounds = array<i64: 8, 256>}]} {
    %c0 = arith.constant 0 : index
    %c0_0 = arith.constant 0 : index
    %0 = vector.load %arg1[%c0, %c0_0] : memref<8x256xf32, #tpu.memory_space<vmem>>, vector<8x256xf32>
    %c0_1 = arith.constant 0 : index
    %c0_2 = arith.constant 0 : index
    %1 = vector.load %arg2[%c0_1, %c0_2] : memref<256x256xf32, #tpu.memory_space<vmem>>, vector<256x256xf32>
    %cst = arith.constant dense<0.000000e+00> : vector<8x256xf32>
    %2 = tpu.matmul %0, %1, %cst {dimension_numbers = #tpu.dot_dimension_numbers<[1], [0], [0], [1], [0, 0, 1, 1], [], []>} : vector<8x256xf32>, vector<256x256xf32>, vector<8x256xf32> -> vector<8x256xf32>
    %c0_3 = arith.constant 0 : index
    %c0_4 = arith.constant 0 : index
    %3 = vector.load %arg3[%c0_3, %c0_4] : memref<1x256xf32, #tpu.memory_space<vmem>>, vector<1x256xf32>
    %4 = vector.broadcast %3 : vector<1x256xf32> to vector<8x256xf32>
    %5 = arith.addf %2, %4 : vector<8x256xf32>
    %cst_5 = arith.constant 0.000000e+00 : f32
    %6 = vector.broadcast %cst_5 : f32 to vector<8x256xf32>
    %7 = arith.maximumf %5, %6 : vector<8x256xf32>
    %c0_6 = arith.constant 0 : index
    %c0_7 = arith.constant 0 : index
    %8 = vector.load %arg4[%c0_6, %c0_7] : memref<256x256xf32, #tpu.memory_space<vmem>>, vector<256x256xf32>
    %cst_8 = arith.constant dense<0.000000e+00> : vector<8x256xf32>
    %9 = tpu.matmul %7, %8, %cst_8 {dimension_numbers = #tpu.dot_dimension_numbers<[1], [0], [0], [1], [0, 0, 1, 1], [], []>} : vector<8x256xf32>, vector<256x256xf32>, vector<8x256xf32> -> vector<8x256xf32>
    %c0_9 = arith.constant 0 : index
    %c0_10 = arith.constant 0 : index
    %10 = vector.load %arg5[%c0_9, %c0_10] : memref<1x256xf32, #tpu.memory_space<vmem>>, vector<1x256xf32>
    %11 = vector.broadcast %10 : vector<1x256xf32> to vector<8x256xf32>
    %12 = arith.addf %9, %11 : vector<8x256xf32>
    %c0_11 = arith.constant 0 : index
    %c0_12 = arith.constant 0 : index
    %13 = vector.load %arg6[%c0_11, %c0_12] : memref<8x256xf32, #tpu.memory_space<vmem>>, vector<8x256xf32>
    tpu.vector_store %arg6[%c0_11, %c0_12], %12 {strides = array<i32>} : memref<8x256xf32, #tpu.memory_space<vmem>>, vector<8x256xf32>,
    return
  }
  func.func @transform_0(%arg0: i32) -> (i32, i32) {
    %c0_i32 = arith.constant 0 : i32
    %c0_i32_0 = arith.constant 0 : i32
    return %arg0, %c0_i32 : i32, i32
  }
  func.func @transform_1(%arg0: i32) -> (i32, i32) {
    %c0_i32 = arith.constant 0 : i32
    %c0_i32_0 = arith.constant 0 : i32
    %c0_i32_1 = arith.constant 0 : i32
    return %c0_i32, %c0_i32_0 : i32, i32
  }
  func.func @transform_2(%arg0: i32) -> (i32, i32) {
    %c0_i32 = arith.constant 0 : i32
    %c0_i32_0 = arith.constant 0 : i32
    %c0_i32_1 = arith.constant 0 : i32
    return %c0_i32, %c0_i32_0 : i32, i32
  }
  func.func @transform_3(%arg0: i32) -> (i32, i32) {
    %c0_i32 = arith.constant 0 : i32
    %c0_i32_0 = arith.constant 0 : i32
    %c0_i32_1 = arith.constant 0 : i32
    return %c0_i32, %c0_i32_0 : i32, i32
  }
  func.func @transform_4(%arg0: i32) -> (i32, i32) {
    %c0_i32 = arith.constant 0 : i32
    %c0_i32_0 = arith.constant 0 : i32
    %c0_i32_1 = arith.constant 0 : i32
    return %c0_i32, %c0_i32_0 : i32, i32
  }
  func.func @transform_5(%arg0: i32) -> (i32, i32) {
    %c0_i32 = arith.constant 0 : i32
    %c0_i32_0 = arith.constant 0 : i32
    return %arg0, %c0_i32 : i32, i32
  }
}

</mosaic_0001>

<llo_original>
// kernel: _ffn_padded.1
$region0: #{_ffn_padded.1}
  #allocation0 [shape = 'u32[]', space=smem, size = 0x4, offset = 0x4, fixed_abs, tag = 'smem constant byte address 0x4 - core index']
  #allocation1 [shape = 'u32[144,128]{1,0:T(1,128)}', space=vmem, size = 0x12000, scoped, tag = 'internal scratch']
  %s0 = inlined_call_operand.vmem [shape: f32[8,256], index: 0, kind: input, shape index: {}]
  %s1 = inlined_call_operand.vmem [shape: f32[256,256], index: 1, kind: input, shape index: {}]
  %s2 = inlined_call_operand.vmem [shape: f32[1,256], index: 2, kind: input, shape index: {}]
  %s3 = inlined_call_operand.vmem [shape: f32[256,256], index: 3, kind: input, shape index: {}]
  %s4 = inlined_call_operand.vmem [shape: f32[1,256], index: 4, kind: input, shape index: {}]
  %s5 = inlined_call_operand.hbm [shape: f32[8,256], index: 5, kind: output, shape index: {}]
  %s6 = sld [smem:[#allocation0]]
  $region30: #{_ffn_padded.1} parent=0
    _
  %s8 = ssub.s32 1, %s6
  %s9 = scalar_select 0, %s8, %s6
  $region1: #{_ffn_padded.1} parent=0
    #allocation2 [shape = 'u8[8192]{0}', space=vmem, size = 0x2000, scoped, tag = 'output window, operand 0, single buffered']
    #allocation3 [shape = 's32[1]{0}', space=sflag, size = 0x4, scoped, tag = 'scoped memory for _ffn_padded.1']
    %10 = vsyncpa [#allocation3], 0
    // Predicated region
    $region2: #{_ffn_padded.1} parent=1 // pred_check
      _
    $region3: #{_ffn_padded.1} parent=1 // pred_check_branch
      %12 = sbr.rel (0) target = $region5
    $region4: #{_ffn_padded.1} parent=1 // pred_region
      _
    $region5: #{_ffn_padded.1} parent=1 // pred_fallthru
      _
    // Predicated region
    $region6: #{_ffn_padded.1} parent=1 // pred_check
      _
    $region7: #{_ffn_padded.1} parent=1 // pred_check_branch
      %14 = sbr.rel (0) target = $region9
    $region8: #{_ffn_padded.1} parent=1 // pred_region
      _
    $region9: #{_ffn_padded.1} parent=1 // pred_fallthru
      _
    // Predicated region
    $region10: #{_ffn_padded.1} parent=1 // pred_check
      _
    $region11: #{_ffn_padded.1} parent=1 // pred_check_branch
      %16 = sbr.rel (0) target = $region13
    $region12: #{_ffn_padded.1} parent=1 // pred_region
      _
    $region13: #{_ffn_padded.1} parent=1 // pred_fallthru
      _
    // Predicated region
    $region14: #{_ffn_padded.1} parent=1 // pred_check
      _
    $region15: #{_ffn_padded.1} parent=1 // pred_check_branch
      %18 = sbr.rel (0) target = $region17
    $region16: #{_ffn_padded.1} parent=1 // pred_region
      _
    $region17: #{_ffn_padded.1} parent=1 // pred_fallthru
      _
    // Predicated region
    $region18: #{_ffn_padded.1} parent=1 // pred_check
      _
    $region19: #{_ffn_padded.1} parent=1 // pred_check_branch
      %20 = sbr.rel (0) target = $region21
    $region20: #{_ffn_padded.1} parent=1 // pred_region
      _
    $region21: #{_ffn_padded.1} parent=1 // pred_fallthru
      _
    %v21 = vld [vmem:[%s0] sm:$0xff]
    %v22 = vld [vmem:[%s0 + $0x8] sm:$0xff]
    %v23 = vld [vmem:[%s1] sm:$0xff]
    %v24 = vld [vmem:[%s1 + $0x8] sm:$0xff]
    %v25 = vld [vmem:[%s1 + $0x10] sm:$0xff]
    %v26 = vld [vmem:[%s1 + $0x18] sm:$0xff]
    %v27 = vld [vmem:[%s1 + $0x20] sm:$0xff]
    %v28 = vld [vmem:[%s1 + $0x28] sm:$0xff]
    %v29 = vld [vmem:[%s1 + $0x30] sm:$0xff]
    %v30 = vld [vmem:[%s1 + $0x38] sm:$0xff]
    %v31 = vld [vmem:[%s1 + $0x40] sm:$0xff]
    %v32 = vld [vmem:[%s1 + $0x48] sm:$0xff]
    %v33 = vld [vmem:[%s1 + $0x50] sm:$0xff]
    %v34 = vld [vmem:[%s1 + $0x58] sm:$0xff]
    %v35 = vld [vmem:[%s1 + $0x60] sm:$0xff]
    %v36 = vld [vmem:[%s1 + $0x68] sm:$0xff]
    %v37 = vld [vmem:[%s1 + $0x70] sm:$0xff]
    %v38 = vld [vmem:[%s1 + $0x78] sm:$0xff]
    %v39 = vld [vmem:[%s1 + $0x80] sm:$0xff]
    %v40 = vld [vmem:[%s1 + $0x88] sm:$0xff]
    %v41 = vld [vmem:[%s1 + $0x90] sm:$0xff]
    %v42 = vld [vmem:[%s1 + $0x98] sm:$0xff]
    %v43 = vld [vmem:[%s1 + $0xa0] sm:$0xff]
    %v44 = vld [vmem:[%s1 + $0xa8] sm:$0xff]
    %v45 = vld [vmem:[%s1 + $0xb0] sm:$0xff]
    %v46 = vld [vmem:[%s1 + $0xb8] sm:$0xff]
    %v47 = vld [vmem:[%s1 + $0xc0] sm:$0xff]
    %v48 = vld [vmem:[%s1 + $0xc8] sm:$0xff]
    %v49 = vld [vmem:[%s1 + $0xd0] sm:$0xff]
    %v50 = vld [vmem:[%s1 + $0xd8] sm:$0xff]
    %v51 = vld [vmem:[%s1 + $0xe0] sm:$0xff]
    %v52 = vld [vmem:[%s1 + $0xe8] sm:$0xff]
    %v53 = vld [vmem:[%s1 + $0xf0] sm:$0xff]
    %v54 = vld [vmem:[%s1 + $0xf8] sm:$0xff]
    %v55 = vld [vmem:[%s1 + $0x100] sm:$0xff]
    %v56 = vld [vmem:[%s1 + $0x108] sm:$0xff]
    %v57 = vld [vmem:[%s1 + $0x110] sm:$0xff]
    %v58 = vld [vmem:[%s1 + $0x118] sm:$0xff]
    %v59 = vld [vmem:[%s1 + $0x120] sm:$0xff]
    %v60 = vld [vmem:[%s1 + $0x128] sm:$0xff]
    %v61 = vld [vmem:[%s1 + $0x130] sm:$0xff]
    %v62 = vld [vmem:[%s1 + $0x138] sm:$0xff]
    %v63 = vld [vmem:[%s1 + $0x140] sm:$0xff]
    %v64 = vld [vmem:[%s1 + $0x148] sm:$0xff]
    %v65 = vld [vmem:[%s1 + $0x150] sm:$0xff]
    %v66 = vld [vmem:[%s1 + $0x158] sm:$0xff]
    %v67 = vld [vmem:[%s1 + $0x160] sm:$0xff]
    %v68 = vld [vmem:[%s1 + $0x168] sm:$0xff]
    %v69 = vld [vmem:[%s1 + $0x170] sm:$0xff]
    %v70 = vld [vmem:[%s1 + $0x178] sm:$0xff]
    %v71 = vld [vmem:[%s1 + $0x180] sm:$0xff]
    %v72 = vld [vmem:[%s1 + $0x188] sm:$0xff]
    %v73 = vld [vmem:[%s1 + $0x190] sm:$0xff]
    %v74 = vld [vmem:[%s1 + $0x198] sm:$0xff]
    %v75 = vld [vmem:[%s1 + $0x1a0] sm:$0xff]
    %v76 = vld [vmem:[%s1 + $0x1a8] sm:$0xff]
    %v77 = vld [vmem:[%s1 + $0x1b0] sm:$0xff]
    %v78 = vld [vmem:[%s1 + $0x1b8] sm:$0xff]
    %v79 = vld [vmem:[%s1 + $0x1c0] sm:$0xff]
    %v80 = vld [vmem:[%s1 + $0x1c8] sm:$0xff]
    %v81 = vld [vmem:[%s1 + $0x1d0] sm:$0xff]
    %v82 = vld [vmem:[%s1 + $0x1d8] sm:$0xff]
    %v83 = vld [vmem:[%s1 + $0x1e0] sm:$0xff]
    %v84 = vld [vmem:[%s1 + $0x1e8] sm:$0xff]
    %v85 = vld [vmem:[%s1 + $0x1f0] sm:$0xff]
    %v86 = vld [vmem:[%s1 + $0x1f8] sm:$0xff]
    %v87 = vld [vmem:[%s2] sm:$0x3]
    %v89 = vlaneseq
    %v90 = vshrl.u32 %v89, 7
    %v91 = vsub.s32 0, %v90
    %v92 = vrot.slane %v87, %v91
    %v93 = vlaneseq
    %v94 = vshrl.u32 %v93, 7
    %v95 = vsub.s32 1, %v94
    %v96 = vrot.slane %v87, %v95
    %99 = vmatprep.subr.mxu0 %v54
    %100 = vmatpush1.msra.mxu0 %v53
    %101 = vmatprep.subr.mxu0 %v52
    %102 = vmatpush1.msra.mxu0 %v51
    %103 = vmatprep.subr.mxu0 %v50
    %104 = vmatpush1.msra.mxu0 %v49
    %105 = vmatprep.subr.mxu0 %v48
    %106 = vmatpush1.msra.mxu0 %v47
    %107 = vmatprep.subr.mxu0 %v46
    %108 = vmatpush1.msra.mxu0 %v45
    %109 = vmatprep.subr.mxu0 %v44
    %110 = vmatpush1.msra.mxu0 %v43
    %111 = vmatprep.subr.mxu0 %v42
    %112 = vmatpush1.msra.mxu0 %v41
    %113 = vmatprep.subr.mxu0 %v40
    %114 = vmatpush1.msra.mxu0 %v39
    %115 = vmatprep.subr.mxu0 %v38
    %116 = vmatpush1.msra.mxu0 %v37
    %117 = vmatprep.subr.mxu0 %v36
    %118 = vmatpush1.msra.mxu0 %v35
    %119 = vmatprep.subr.mxu0 %v34
    %120 = vmatpush1.msra.mxu0 %v33
    %121 = vmatprep.subr.mxu0 %v32
    %122 = vmatpush1.msra.mxu0 %v31
    %123 = vmatprep.subr.mxu0 %v30
    %124 = vmatpush1.msra.mxu0 %v29
    %125 = vmatprep.subr.mxu0 %v28
    %126 = vmatpush1.msra.mxu0 %v27
    %127 = vmatprep.subr.mxu0 %v26
    %128 = vmatpush1.msra.mxu0 %v25
    %129 = vmatprep.subr.mxu0 %v24
    %130 = vmatpush1.msra.mxu0 %v23
    %131 = vmatprep.subr.mxu0 %v86
    %132 = vmatpush2.msra.mxu0 %v85
    %133 = vmatprep.subr.mxu0 %v84
    %134 = vmatpush2.msra.mxu0 %v83
    %135 = vmatprep.subr.mxu0 %v82
    %136 = vmatpush2.msra.mxu0 %v81
    %137 = vmatprep.subr.mxu0 %v80
    %138 = vmatpush2.msra.mxu0 %v79
    %139 = vmatprep.subr.mxu0 %v78
    %140 = vmatpush2.msra.mxu0 %v77
    %141 = vmatprep.subr.mxu0 %v76
    %142 = vmatpush2.msra.mxu0 %v75
    %143 = vmatprep.subr.mxu0 %v74
    %144 = vmatpush2.msra.mxu0 %v73
    %145 = vmatprep.subr.mxu0 %v72
    %146 = vmatpush2.msra.mxu0 %v71
    %147 = vmatprep.subr.mxu0 %v70
    %148 = vmatpush2.msra.mxu0 %v69
    %149 = vmatprep.subr.mxu0 %v68
    %150 = vmatpush2.msra.mxu0 %v67
    %151 = vmatprep.subr.mxu0 %v66
    %152 = vmatpush2.msra.mxu0 %v65
    %153 = vmatprep.subr.mxu0 %v64
    %154 = vmatpush2.msra.mxu0 %v63
    %155 = vmatprep.subr.mxu0 %v62
    %156 = vmatpush2.msra.mxu0 %v61
    %157 = vmatprep.subr.mxu0 %v60
    %158 = vmatpush2.msra.mxu0 %v59
    %159 = vmatprep.subr.mxu0 %v58
    %160 = vmatpush2.msra.mxu0 %v57
    %161 = vmatprep.subr.mxu0 %v56
    %162 = vmatpush2.msra.mxu0 %v55
    %163 = vmatprep.mubr.f32.mxu0 %v22
    %164 = vmatmul.mubr.f32.gmra.mxu0 %v21
    %v165 = vpop.f32.mrf.mxu0
    %v166 = vadd.f32 %v92, %v165
    %v167 = vpop.f32.mrf.mxu0
    %v168 = vadd.f32 %v96, %v167
    %169 = vdwg.mxu0
    %v170 = vmax.f32 %v166, 0.0
    %v171 = vmax.f32 %v168, 0.0
    %v172 = vld [vmem:[%s3] sm:$0xff]
    %v173 = vld [vmem:[%s3 + $0x8] sm:$0xff]
    %v174 = vld [vmem:[%s3 + $0x10] sm:$0xff]
    %v175 = vld [vmem:[%s3 + $0x18] sm:$0xff]
    %v176 = vld [vmem:[%s3 + $0x20] sm:$0xff]
    %v177 = vld [vmem:[%s3 + $0x28] sm:$0xff]
    %v178 = vld [vmem:[%s3 + $0x30] sm:$0xff]
    %v179 = vld [vmem:[%s3 + $0x38] sm:$0xff]
    %v180 = vld [vmem:[%s3 + $0x40] sm:$0xff]
    %v181 = vld [vmem:[%s3 + $0x48] sm:$0xff]
    %v182 = vld [vmem:[%s3 + $0x50] sm:$0xff]
    %v183 = vld [vmem:[%s3 + $0x58] sm:$0xff]
    %v184 = vld [vmem:[%s3 + $0x60] sm:$0xff]
    %v185 = vld [vmem:[%s3 + $0x68] sm:$0xff]
    %v186 = vld [vmem:[%s3 + $0x70] sm:$0xff]
    %v187 = vld [vmem:[%s3 + $0x78] sm:$0xff]
    %v188 = vld [vmem:[%s3 + $0x80] sm:$0xff]
    %v189 = vld [vmem:[%s3 + $0x88] sm:$0xff]
    %v190 = vld [vmem:[%s3 + $0x90] sm:$0xff]
    %v191 = vld [vmem:[%s3 + $0x98] sm:$0xff]
    %v192 = vld [vmem:[%s3 + $0xa0] sm:$0xff]
    %v193 = vld [vmem:[%s3 + $0xa8] sm:$0xff]
    %v194 = vld [vmem:[%s3 + $0xb0] sm:$0xff]
    %v195 = vld [vmem:[%s3 + $0xb8] sm:$0xff]
    %v196 = vld [vmem:[%s3 + $0xc0] sm:$0xff]
    %v197 = vld [vmem:[%s3 + $0xc8] sm:$0xff]
    %v198 = vld [vmem:[%s3 + $0xd0] sm:$0xff]
    %v199 = vld [vmem:[%s3 + $0xd8] sm:$0xff]
    %v200 = vld [vmem:[%s3 + $0xe0] sm:$0xff]
    %v201 = vld [vmem:[%s3 + $0xe8] sm:$0xff]
    %v202 = vld [vmem:[%s3 + $0xf0] sm:$0xff]
    %v203 = vld [vmem:[%s3 + $0xf8] sm:$0xff]
    %v204 = vld [vmem:[%s3 + $0x100] sm:$0xff]
    %v205 = vld [vmem:[%s3 + $0x108] sm:$0xff]
    %v206 = vld [vmem:[%s3 + $0x110] sm:$0xff]
    %v207 = vld [vmem:[%s3 + $0x118] sm:$0xff]
    %v208 = vld [vmem:[%s3 + $0x120] sm:$0xff]
    %v209 = vld [vmem:[%s3 + $0x128] sm:$0xff]
    %v210 = vld [vmem:[%s3 + $0x130] sm:$0xff]
    %v211 = vld [vmem:[%s3 + $0x138] sm:$0xff]
    %v212 = vld [vmem:[%s3 + $0x140] sm:$0xff]
    %v213 = vld [vmem:[%s3 + $0x148] sm:$0xff]
    %v214 = vld [vmem:[%s3 + $0x150] sm:$0xff]
    %v215 = vld [vmem:[%s3 + $0x158] sm:$0xff]
    %v216 = vld [vmem:[%s3 + $0x160] sm:$0xff]
    %v217 = vld [vmem:[%s3 + $0x168] sm:$0xff]
    %v218 = vld [vmem:[%s3 + $0x170] sm:$0xff]
    %v219 = vld [vmem:[%s3 + $0x178] sm:$0xff]
    %v220 = vld [vmem:[%s3 + $0x180] sm:$0xff]
    %v221 = vld [vmem:[%s3 + $0x188] sm:$0xff]
    %v222 = vld [vmem:[%s3 + $0x190] sm:$0xff]
    %v223 = vld [vmem:[%s3 + $0x198] sm:$0xff]
    %v224 = vld [vmem:[%s3 + $0x1a0] sm:$0xff]
    %v225 = vld [vmem:[%s3 + $0x1a8] sm:$0xff]
    %v226 = vld [vmem:[%s3 + $0x1b0] sm:$0xff]
    %v227 = vld [vmem:[%s3 + $0x1b8] sm:$0xff]
    %v228 = vld [vmem:[%s3 + $0x1c0] sm:$0xff]
    %v229 = vld [vmem:[%s3 + $0x1c8] sm:$0xff]
    %v230 = vld [vmem:[%s3 + $0x1d0] sm:$0xff]
    %v231 = vld [vmem:[%s3 + $0x1d8] sm:$0xff]
    %v232 = vld [vmem:[%s3 + $0x1e0] sm:$0xff]
    %v233 = vld [vmem:[%s3 + $0x1e8] sm:$0xff]
    %v234 = vld [vmem:[%s3 + $0x1f0] sm:$0xff]
    %v235 = vld [vmem:[%s3 + $0x1f8] sm:$0xff]
    %v236 = vld [vmem:[%s4] sm:$0x3]
    %v238 = vlaneseq
    %v239 = vshrl.u32 %v238, 7
    %v240 = vsub.s32 0, %v239
    %v241 = vrot.slane %v236, %v240
    %v242 = vlaneseq
    %v243 = vshrl.u32 %v242, 7
    %v244 = vsub.s32 1, %v243
    %v245 = vrot.slane %v236, %v244
    %248 = vmatprep.subr.mxu0 %v203
    %249 = vmatpush1.msra.mxu0 %v202
    %250 = vmatprep.subr.mxu0 %v201
    %251 = vmatpush1.msra.mxu0 %v200
    %252 = vmatprep.subr.mxu0 %v199
    %253 = vmatpush1.msra.mxu0 %v198
    %254 = vmatprep.subr.mxu0 %v197
    %255 = vmatpush1.msra.mxu0 %v196
    %256 = vmatprep.subr.mxu0 %v195
    %257 = vmatpush1.msra.mxu0 %v194
    %258 = vmatprep.subr.mxu0 %v193
    %259 = vmatpush1.msra.mxu0 %v192
    %260 = vmatprep.subr.mxu0 %v191
    %261 = vmatpush1.msra.mxu0 %v190
    %262 = vmatprep.subr.mxu0 %v189
    %263 = vmatpush1.msra.mxu0 %v188
    %264 = vmatprep.subr.mxu0 %v187
    %265 = vmatpush1.msra.mxu0 %v186
    %266 = vmatprep.subr.mxu0 %v185
    %267 = vmatpush1.msra.mxu0 %v184
    %268 = vmatprep.subr.mxu0 %v183
    %269 = vmatpush1.msra.mxu0 %v182
    %270 = vmatprep.subr.mxu0 %v181
    %271 = vmatpush1.msra.mxu0 %v180
    %272 = vmatprep.subr.mxu0 %v179
    %273 = vmatpush1.msra.mxu0 %v178
    %274 = vmatprep.subr.mxu0 %v177
    %275 = vmatpush1.msra.mxu0 %v176
    %276 = vmatprep.subr.mxu0 %v175
    %277 = vmatpush1.msra.mxu0 %v174
    %278 = vmatprep.subr.mxu0 %v173
    %279 = vmatpush1.msra.mxu0 %v172
    %280 = vmatprep.subr.mxu0 %v235
    %281 = vmatpush2.msra.mxu0 %v234
    %282 = vmatprep.subr.mxu0 %v233
    %283 = vmatpush2.msra.mxu0 %v232
    %284 = vmatprep.subr.mxu0 %v231
    %285 = vmatpush2.msra.mxu0 %v230
    %286 = vmatprep.subr.mxu0 %v229
    %287 = vmatpush2.msra.mxu0 %v228
    %288 = vmatprep.subr.mxu0 %v227
    %289 = vmatpush2.msra.mxu0 %v226
    %290 = vmatprep.subr.mxu0 %v225
    %291 = vmatpush2.msra.mxu0 %v224
    %292 = vmatprep.subr.mxu0 %v223
    %293 = vmatpush2.msra.mxu0 %v222
    %294 = vmatprep.subr.mxu0 %v221
    %295 = vmatpush2.msra.mxu0 %v220
    %296 = vmatprep.subr.mxu0 %v219
    %297 = vmatpush2.msra.mxu0 %v218
    %298 = vmatprep.subr.mxu0 %v217
    %299 = vmatpush2.msra.mxu0 %v216
    %300 = vmatprep.subr.mxu0 %v215
    %301 = vmatpush2.msra.mxu0 %v214
    %302 = vmatprep.subr.mxu0 %v213
    %303 = vmatpush2.msra.mxu0 %v212
    %304 = vmatprep.subr.mxu0 %v211
    %305 = vmatpush2.msra.mxu0 %v210
    %306 = vmatprep.subr.mxu0 %v209
    %307 = vmatpush2.msra.mxu0 %v208
    %308 = vmatprep.subr.mxu0 %v207
    %309 = vmatpush2.msra.mxu0 %v206
    %310 = vmatprep.subr.mxu0 %v205
    %311 = vmatpush2.msra.mxu0 %v204
    %312 = vmatprep.mubr.f32.mxu0 %v171
    %313 = vmatmul.mubr.f32.gmra.mxu0 %v170
    %v314 = vpop.f32.mrf.mxu0
    %v315 = vadd.f32 %v241, %v314
    %v316 = vpop.f32.mrf.mxu0
    %v317 = vadd.f32 %v245, %v316
    %318 = vdwg.mxu0
    %319 = vst [vmem:[#allocation2] sm:$0xff] %v315
    %320 = vst [vmem:[#allocation2 + $0x8] sm:$0xff] %v317
    // Predicated region
    $region22: #{_ffn_padded.1} parent=1 // pred_check
      _
    $region23: #{_ffn_padded.1} parent=1 // pred_check_branch
      %322 = sbr.rel (0) target = $region25
    $region24: #{_ffn_padded.1} parent=1 // pred_region
      %s324 = ssub.s32 256, 256
      %325 = vsyncadd [#allocation3], %s324
      %s327 = sshll.u32 [#allocation2], 4
      %s328 = int_to_ptr.vmem [resolvable:$true] %s327
      %330 = dma.vmem_to_hbm [thread:$0]  %s328, 256, %s5, [#allocation3]
    $region25: #{_ffn_padded.1} parent=1 // pred_fallthru
      _
    // Predicated region
    $region26: #{_ffn_padded.1} parent=1 // pred_check
      _
    $region27: #{_ffn_padded.1} parent=1 // pred_check_branch
      %332 = sbr.rel (0) target = $region29
    $region28: #{_ffn_padded.1} parent=1 // pred_region
      %333 = dma.done [#allocation3], 256
    $region29: #{_ffn_padded.1} parent=1 // pred_fallthru
      _
    %334 = vsyncpa [#allocation3], 1

// kernel: _ffn_padded.1
$region0: #{_ffn_padded.1}
  #allocation0 [shape = 'u32[]', space=smem, size = 0x4, offset = 0x4, fixed_abs, tag = 'smem constant byte address 0x4 - core index']
  #allocation1 [shape = 'u32[144,128]{1,0:T(1,128)}', space=vmem, size = 0x12000, scoped, tag = 'internal scratch']
  %s0 = inlined_call_operand.vmem [shape: f32[8,256], index: 0, kind: input, shape index: {}]
  %s1 = inlined_call_operand.vmem [shape: f32[256,256], index: 1, kind: input, shape index: {}]
  %s2 = inlined_call_operand.vmem [shape: f32[1,256], index: 2, kind: input, shape index: {}]
  %s3 = inlined_call_operand.vmem [shape: f32[256,256], index: 3, kind: input, shape index: {}]
  %s4 = inlined_call_operand.vmem [shape: f32[1,256], index: 4, kind: input, shape index: {}]
  %s5 = inlined_call_operand.hbm [shape: f32[8,256], index: 5, kind: output, shape index: {}]
  %s6 = sld [smem:[#allocation0]]
  $region30: #{_ffn_padded.1} parent=0
    _
  %s8 = ssub.s32 1, %s6
  %s9 = scalar_select 0, %s8, %s6
  $region1: #{_ffn_padded.1} parent=0
    #allocation2 [shape = 'u8[8192]{0}', space=vmem, size = 0x2000, scoped, tag = 'output window, operand 0, single buffered']
    #allocation3 [shape = 's32[1]{0}', space=sflag, size = 0x4, scoped, tag = 'scoped memory for _ffn_padded.1']
    %10 = vsyncpa [#allocation3], 0
    // Predicated region
    $region2: #{_ffn_padded.1} parent=1 // pred_check
      _
    $region3: #{_ffn_padded.1} parent=1 // pred_check_branch
      %12 = sbr.rel (0) target = $region5
    $region4: #{_ffn_padded.1} parent=1 // pred_region
      _
    $region5: #{_ffn_padded.1} parent=1 // pred_fallthru
      _
    // Predicated region
    $region6: #{_ffn_padded.1} parent=1 // pred_check
      _
    $region7: #{_ffn_padded.1} parent=1 // pred_check_branch
      %14 = sbr.rel (0) target = $region9
    $region8: #{_ffn_padded.1} parent=1 // pred_region
      _
    $region9: #{_ffn_padded.1} parent=1 // pred_fallthru
      _
    // Predicated region
    $region10: #{_ffn_padded.1} parent=1 // pred_check
      _
    $region11: #{_ffn_padded.1} parent=1 // pred_check_branch
      %16 = sbr.rel (0) target = $region13
    $region12: #{_ffn_padded.1} parent=1 // pred_region
      _
    $region13: #{_ffn_padded.1} parent=1 // pred_fallthru
      _
    // Predicated region
    $region14: #{_ffn_padded.1} parent=1 // pred_check
      _
    $region15: #{_ffn_padded.1} parent=1 // pred_check_branch
      %18 = sbr.rel (0) target = $region17
    $region16: #{_ffn_padded.1} parent=1 // pred_region
      _
    $region17: #{_ffn_padded.1} parent=1 // pred_fallthru
      _
    // Predicated region
    $region18: #{_ffn_padded.1} parent=1 // pred_check
      _
    $region19: #{_ffn_padded.1} parent=1 // pred_check_branch
      %20 = sbr.rel (0) target = $region21
    $region20: #{_ffn_padded.1} parent=1 // pred_region
      _
    $region21: #{_ffn_padded.1} parent=1 // pred_fallthru
      _
    %v21 = vld [vmem:[%s0] sm:$0xff]
    %v22 = vld [vmem:[%s0 + $0x8] sm:$0xff]
    %v23 = vld [vmem:[%s1] sm:$0xff]
    %v24 = vld [vmem:[%s1 + $0x8] sm:$0xff]
    %v25 = vld [vmem:[%s1 + $0x10] sm:$0xff]
    %v26 = vld [vmem:[%s1 + $0x18] sm:$0xff]
    %v27 = vld [vmem:[%s1 + $0x20] sm:$0xff]
    %v28 = vld [vmem:[%s1 + $0x28] sm:$0xff]
    %v29 = vld [vmem:[%s1 + $0x30] sm:$0xff]
    %v30 = vld [vmem:[%s1 + $0x38] sm:$0xff]
    %v31 = vld [vmem:[%s1 + $0x40] sm:$0xff]
    %v32 = vld [vmem:[%s1 + $0x48] sm:$0xff]
    %v33 = vld [vmem:[%s1 + $0x50] sm:$0xff]
    %v34 = vld [vmem:[%s1 + $0x58] sm:$0xff]
    %v35 = vld [vmem:[%s1 + $0x60] sm:$0xff]
    %v36 = vld [vmem:[%s1 + $0x68] sm:$0xff]
    %v37 = vld [vmem:[%s1 + $0x70] sm:$0xff]
    %v38 = vld [vmem:[%s1 + $0x78] sm:$0xff]
    %v39 = vld [vmem:[%s1 + $0x80] sm:$0xff]
    %v40 = vld [vmem:[%s1 + $0x88] sm:$0xff]
    %v41 = vld [vmem:[%s1 + $0x90] sm:$0xff]
    %v42 = vld [vmem:[%s1 + $0x98] sm:$0xff]
    %v43 = vld [vmem:[%s1 + $0xa0] sm:$0xff]
    %v44 = vld [vmem:[%s1 + $0xa8] sm:$0xff]
    %v45 = vld [vmem:[%s1 + $0xb0] sm:$0xff]
    %v46 = vld [vmem:[%s1 + $0xb8] sm:$0xff]
    %v47 = vld [vmem:[%s1 + $0xc0] sm:$0xff]
    %v48 = vld [vmem:[%s1 + $0xc8] sm:$0xff]
    %v49 = vld [vmem:[%s1 + $0xd0] sm:$0xff]
    %v50 = vld [vmem:[%s1 + $0xd8] sm:$0xff]
    %v51 = vld [vmem:[%s1 + $0xe0] sm:$0xff]
    %v52 = vld [vmem:[%s1 + $0xe8] sm:$0xff]
    %v53 = vld [vmem:[%s1 + $0xf0] sm:$0xff]
    %v54 = vld [vmem:[%s1 + $0xf8] sm:$0xff]
    %v55 = vld [vmem:[%s1 + $0x100] sm:$0xff]
    %v56 = vld [vmem:[%s1 + $0x108] sm:$0xff]
    %v57 = vld [vmem:[%s1 + $0x110] sm:$0xff]
    %v58 = vld [vmem:[%s1 + $0x118] sm:$0xff]
    %v59 = vld [vmem:[%s1 + $0x120] sm:$0xff]
    %v60 = vld [vmem:[%s1 + $0x128] sm:$0xff]
    %v61 = vld [vmem:[%s1 + $0x130] sm:$0xff]
    %v62 = vld [vmem:[%s1 + $0x138] sm:$0xff]
    %v63 = vld [vmem:[%s1 + $0x140] sm:$0xff]
    %v64 = vld [vmem:[%s1 + $0x148] sm:$0xff]
    %v65 = vld [vmem:[%s1 + $0x150] sm:$0xff]
    %v66 = vld [vmem:[%s1 + $0x158] sm:$0xff]
    %v67 = vld [vmem:[%s1 + $0x160] sm:$0xff]
    %v68 = vld [vmem:[%s1 + $0x168] sm:$0xff]
    %v69 = vld [vmem:[%s1 + $0x170] sm:$0xff]
    %v70 = vld [vmem:[%s1 + $0x178] sm:$0xff]
    %v71 = vld [vmem:[%s1 + $0x180] sm:$0xff]
    %v72 = vld [vmem:[%s1 + $0x188] sm:$0xff]
    %v73 = vld [vmem:[%s1 + $0x190] sm:$0xff]
    %v74 = vld [vmem:[%s1 + $0x198] sm:$0xff]
    %v75 = vld [vmem:[%s1 + $0x1a0] sm:$0xff]
    %v76 = vld [vmem:[%s1 + $0x1a8] sm:$0xff]
    %v77 = vld [vmem:[%s1 + $0x1b0] sm:$0xff]
    %v78 = vld [vmem:[%s1 + $0x1b8] sm:$0xff]
    %v79 = vld [vmem:[%s1 + $0x1c0] sm:$0xff]
    %v80 = vld [vmem:[%s1 + $0x1c8] sm:$0xff]
    %v81 = vld [vmem:[%s1 + $0x1d0] sm:$0xff]
    %v82 = vld [vmem:[%s1 + $0x1d8] sm:$0xff]
    %v83 = vld [vmem:[%s1 + $0x1e0] sm:$0xff]
    %v84 = vld [vmem:[%s1 + $0x1e8] sm:$0xff]
    %v85 = vld [vmem:[%s1 + $0x1f0] sm:$0xff]
    %v86 = vld [vmem:[%s1 + $0x1f8] sm:$0xff]
    %v87 = vld [vmem:[%s2] sm:$0x3]
    %v89 = vlaneseq
    %v90 = vshrl.u32 %v89, 7
    %v91 = vsub.s32 0, %v90
    %v92 = vrot.slane %v87, %v91
    %v93 = vlaneseq
    %v94 = vshrl.u32 %v93, 7
    %v95 = vsub.s32 1, %v94
    %v96 = vrot.slane %v87, %v95
    %99 = vmatprep.subr.mxu0 %v54
    %100 = vmatpush1.msra.mxu0 %v53
    %101 = vmatprep.subr.mxu0 %v52
    %102 = vmatpush1.msra.mxu0 %v51
    %103 = vmatprep.subr.mxu0 %v50
    %104 = vmatpush1.msra.mxu0 %v49
    %105 = vmatprep.subr.mxu0 %v48
    %106 = vmatpush1.msra.mxu0 %v47
    %107 = vmatprep.subr.mxu0 %v46
    %108 = vmatpush1.msra.mxu0 %v45
    %109 = vmatprep.subr.mxu0 %v44
    %110 = vmatpush1.msra.mxu0 %v43
    %111 = vmatprep.subr.mxu0 %v42
    %112 = vmatpush1.msra.mxu0 %v41
    %113 = vmatprep.subr.mxu0 %v40
    %114 = vmatpush1.msra.mxu0 %v39
    %115 = vmatprep.subr.mxu0 %v38
    %116 = vmatpush1.msra.mxu0 %v37
    %117 = vmatprep.subr.mxu0 %v36
    %118 = vmatpush1.msra.mxu0 %v35
    %119 = vmatprep.subr.mxu0 %v34
    %120 = vmatpush1.msra.mxu0 %v33
    %121 = vmatprep.subr.mxu0 %v32
    %122 = vmatpush1.msra.mxu0 %v31
    %123 = vmatprep.subr.mxu0 %v30
    %124 = vmatpush1.msra.mxu0 %v29
    %125 = vmatprep.subr.mxu0 %v28
    %126 = vmatpush1.msra.mxu0 %v27
    %127 = vmatprep.subr.mxu0 %v26
    %128 = vmatpush1.msra.mxu0 %v25
    %129 = vmatprep.subr.mxu0 %v24
    %130 = vmatpush1.msra.mxu0 %v23
    %131 = vmatprep.subr.mxu0 %v86
    %132 = vmatpush2.msra.mxu0 %v85
    %133 = vmatprep.subr.mxu0 %v84
    %134 = vmatpush2.msra.mxu0 %v83
    %135 = vmatprep.subr.mxu0 %v82
    %136 = vmatpush2.msra.mxu0 %v81
    %137 = vmatprep.subr.mxu0 %v80
    %138 = vmatpush2.msra.mxu0 %v79
    %139 = vmatprep.subr.mxu0 %v78
    %140 = vmatpush2.msra.mxu0 %v77
    %141 = vmatprep.subr.mxu0 %v76
    %142 = vmatpush2.msra.mxu0 %v75
    %143 = vmatprep.subr.mxu0 %v74
    %144 = vmatpush2.msra.mxu0 %v73
    %145 = vmatprep.subr.mxu0 %v72
    %146 = vmatpush2.msra.mxu0 %v71
    %147 = vmatprep.subr.mxu0 %v70
    %148 = vmatpush2.msra.mxu0 %v69
    %149 = vmatprep.subr.mxu0 %v68
    %150 = vmatpush2.msra.mxu0 %v67
    %151 = vmatprep.subr.mxu0 %v66
    %152 = vmatpush2.msra.mxu0 %v65
    %153 = vmatprep.subr.mxu0 %v64
    %154 = vmatpush2.msra.mxu0 %v63
    %155 = vmatprep.subr.mxu0 %v62
    %156 = vmatpush2.msra.mxu0 %v61
    %157 = vmatprep.subr.mxu0 %v60
    %158 = vmatpush2.msra.mxu0 %v59
    %159 = vmatprep.subr.mxu0 %v58
    %160 = vmatpush2.msra.mxu0 %v57
    %161 = vmatprep.subr.mxu0 %v56
    %162 = vmatpush2.msra.mxu0 %v55
    %163 = vmatprep.mubr.f32.mxu0 %v22
    %164 = vmatmul.mubr.f32.gmra.mxu0 %v21
    %v165 = vpop.f32.mrf.mxu0
    %v166 = vadd.f32 %v92, %v165
    %v167 = vpop.f32.mrf.mxu0
    %v168 = vadd.f32 %v96, %v167
    %169 = vdwg.mxu0
    %v170 = vmax.f32 %v166, 0.0
    %v171 = vmax.f32 %v168, 0.0
    %v172 = vld [vmem:[%s3] sm:$0xff]
    %v173 = vld [vmem:[%s3 + $0x8] sm:$0xff]
    %v174 = vld [vmem:[%s3 + $0x10] sm:$0xff]
    %v175 = vld [vmem:[%s3 + $0x18] sm:$0xff]
    %v176 = vld [vmem:[%s3 + $0x20] sm:$0xff]
    %v177 = vld [vmem:[%s3 + $0x28] sm:$0xff]
    %v178 = vld [vmem:[%s3 + $0x30] sm:$0xff]
    %v179 = vld [vmem:[%s3 + $0x38] sm:$0xff]
    %v180 = vld [vmem:[%s3 + $0x40] sm:$0xff]
    %v181 = vld [vmem:[%s3 + $0x48] sm:$0xff]
    %v182 = vld [vmem:[%s3 + $0x50] sm:$0xff]
    %v183 = vld [vmem:[%s3 + $0x58] sm:$0xff]
    %v184 = vld [vmem:[%s3 + $0x60] sm:$0xff]
    %v185 = vld [vmem:[%s3 + $0x68] sm:$0xff]
    %v186 = vld [vmem:[%s3 + $0x70] sm:$0xff]
    %v187 = vld [vmem:[%s3 + $0x78] sm:$0xff]
    %v188 = vld [vmem:[%s3 + $0x80] sm:$0xff]
    %v189 = vld [vmem:[%s3 + $0x88] sm:$0xff]
    %v190 = vld [vmem:[%s3 + $0x90] sm:$0xff]
    %v191 = vld [vmem:[%s3 + $0x98] sm:$0xff]
    %v192 = vld [vmem:[%s3 + $0xa0] sm:$0xff]
    %v193 = vld [vmem:[%s3 + $0xa8] sm:$0xff]
    %v194 = vld [vmem:[%s3 + $0xb0] sm:$0xff]
    %v195 = vld [vmem:[%s3 + $0xb8] sm:$0xff]
    %v196 = vld [vmem:[%s3 + $0xc0] sm:$0xff]
    %v197 = vld [vmem:[%s3 + $0xc8] sm:$0xff]
    %v198 = vld [vmem:[%s3 + $0xd0] sm:$0xff]
    %v199 = vld [vmem:[%s3 + $0xd8] sm:$0xff]
    %v200 = vld [vmem:[%s3 + $0xe0] sm:$0xff]
    %v201 = vld [vmem:[%s3 + $0xe8] sm:$0xff]
    %v202 = vld [vmem:[%s3 + $0xf0] sm:$0xff]
    %v203 = vld [vmem:[%s3 + $0xf8] sm:$0xff]
    %v204 = vld [vmem:[%s3 + $0x100] sm:$0xff]
    %v205 = vld [vmem:[%s3 + $0x108] sm:$0xff]
    %v206 = vld [vmem:[%s3 + $0x110] sm:$0xff]
    %v207 = vld [vmem:[%s3 + $0x118] sm:$0xff]
    %v208 = vld [vmem:[%s3 + $0x120] sm:$0xff]
    %v209 = vld [vmem:[%s3 + $0x128] sm:$0xff]
    %v210 = vld [vmem:[%s3 + $0x130] sm:$0xff]
    %v211 = vld [vmem:[%s3 + $0x138] sm:$0xff]
    %v212 = vld [vmem:[%s3 + $0x140] sm:$0xff]
    %v213 = vld [vmem:[%s3 + $0x148] sm:$0xff]
    %v214 = vld [vmem:[%s3 + $0x150] sm:$0xff]
    %v215 = vld [vmem:[%s3 + $0x158] sm:$0xff]
    %v216 = vld [vmem:[%s3 + $0x160] sm:$0xff]
    %v217 = vld [vmem:[%s3 + $0x168] sm:$0xff]
    %v218 = vld [vmem:[%s3 + $0x170] sm:$0xff]
    %v219 = vld [vmem:[%s3 + $0x178] sm:$0xff]
    %v220 = vld [vmem:[%s3 + $0x180] sm:$0xff]
    %v221 = vld [vmem:[%s3 + $0x188] sm:$0xff]
    %v222 = vld [vmem:[%s3 + $0x190] sm:$0xff]
    %v223 = vld [vmem:[%s3 + $0x198] sm:$0xff]
    %v224 = vld [vmem:[%s3 + $0x1a0] sm:$0xff]
    %v225 = vld [vmem:[%s3 + $0x1a8] sm:$0xff]
    %v226 = vld [vmem:[%s3 + $0x1b0] sm:$0xff]
    %v227 = vld [vmem:[%s3 + $0x1b8] sm:$0xff]
    %v228 = vld [vmem:[%s3 + $0x1c0] sm:$0xff]
    %v229 = vld [vmem:[%s3 + $0x1c8] sm:$0xff]
    %v230 = vld [vmem:[%s3 + $0x1d0] sm:$0xff]
    %v231 = vld [vmem:[%s3 + $0x1d8] sm:$0xff]
    %v232 = vld [vmem:[%s3 + $0x1e0] sm:$0xff]
    %v233 = vld [vmem:[%s3 + $0x1e8] sm:$0xff]
    %v234 = vld [vmem:[%s3 + $0x1f0] sm:$0xff]
    %v235 = vld [vmem:[%s3 + $0x1f8] sm:$0xff]
    %v236 = vld [vmem:[%s4] sm:$0x3]
    %v238 = vlaneseq
    %v239 = vshrl.u32 %v238, 7
    %v240 = vsub.s32 0, %v239
    %v241 = vrot.slane %v236, %v240
    %v242 = vlaneseq
    %v243 = vshrl.u32 %v242, 7
    %v244 = vsub.s32 1, %v243
    %v245 = vrot.slane %v236, %v244
    %248 = vmatprep.subr.mxu0 %v203
    %249 = vmatpush1.msra.mxu0 %v202
    %250 = vmatprep.subr.mxu0 %v201
    %251 = vmatpush1.msra.mxu0 %v200
    %252 = vmatprep.subr.mxu0 %v199
    %253 = vmatpush1.msra.mxu0 %v198
    %254 = vmatprep.subr.mxu0 %v197
    %255 = vmatpush1.msra.mxu0 %v196
    %256 = vmatprep.subr.mxu0 %v195
    %257 = vmatpush1.msra.mxu0 %v194
    %258 = vmatprep.subr.mxu0 %v193
    %259 = vmatpush1.msra.mxu0 %v192
    %260 = vmatprep.subr.mxu0 %v191
    %261 = vmatpush1.msra.mxu0 %v190
    %262 = vmatprep.subr.mxu0 %v189
    %263 = vmatpush1.msra.mxu0 %v188
    %264 = vmatprep.subr.mxu0 %v187
    %265 = vmatpush1.msra.mxu0 %v186
    %266 = vmatprep.subr.mxu0 %v185
    %267 = vmatpush1.msra.mxu0 %v184
    %268 = vmatprep.subr.mxu0 %v183
    %269 = vmatpush1.msra.mxu0 %v182
    %270 = vmatprep.subr.mxu0 %v181
    %271 = vmatpush1.msra.mxu0 %v180
    %272 = vmatprep.subr.mxu0 %v179
    %273 = vmatpush1.msra.mxu0 %v178
    %274 = vmatprep.subr.mxu0 %v177
    %275 = vmatpush1.msra.mxu0 %v176
    %276 = vmatprep.subr.mxu0 %v175
    %277 = vmatpush1.msra.mxu0 %v174
    %278 = vmatprep.subr.mxu0 %v173
    %279 = vmatpush1.msra.mxu0 %v172
    %280 = vmatprep.subr.mxu0 %v235
    %281 = vmatpush2.msra.mxu0 %v234
    %282 = vmatprep.subr.mxu0 %v233
    %283 = vmatpush2.msra.mxu0 %v232
    %284 = vmatprep.subr.mxu0 %v231
    %285 = vmatpush2.msra.mxu0 %v230
    %286 = vmatprep.subr.mxu0 %v229
    %287 = vmatpush2.msra.mxu0 %v228
    %288 = vmatprep.subr.mxu0 %v227
    %289 = vmatpush2.msra.mxu0 %v226
    %290 = vmatprep.subr.mxu0 %v225
    %291 = vmatpush2.msra.mxu0 %v224
    %292 = vmatprep.subr.mxu0 %v223
    %293 = vmatpush2.msra.mxu0 %v222
    %294 = vmatprep.subr.mxu0 %v221
    %295 = vmatpush2.msra.mxu0 %v220
    %296 = vmatprep.subr.mxu0 %v219
    %297 = vmatpush2.msra.mxu0 %v218
    %298 = vmatprep.subr.mxu0 %v217
    %299 = vmatpush2.msra.mxu0 %v216
    %300 = vmatprep.subr.mxu0 %v215
    %301 = vmatpush2.msra.mxu0 %v214
    %302 = vmatprep.subr.mxu0 %v213
    %303 = vmatpush2.msra.mxu0 %v212
    %304 = vmatprep.subr.mxu0 %v211
    %305 = vmatpush2.msra.mxu0 %v210
    %306 = vmatprep.subr.mxu0 %v209
    %307 = vmatpush2.msra.mxu0 %v208
    %308 = vmatprep.subr.mxu0 %v207
    %309 = vmatpush2.msra.mxu0 %v206
    %310 = vmatprep.subr.mxu0 %v205
    %311 = vmatpush2.msra.mxu0 %v204
    %312 = vmatprep.mubr.f32.mxu0 %v171
    %313 = vmatmul.mubr.f32.gmra.mxu0 %v170
    %v314 = vpop.f32.mrf.mxu0
    %v315 = vadd.f32 %v241, %v314
    %v316 = vpop.f32.mrf.mxu0
    %v317 = vadd.f32 %v245, %v316
    %318 = vdwg.mxu0
    %319 = vst [vmem:[#allocation2] sm:$0xff] %v315
    %320 = vst [vmem:[#allocation2 + $0x8] sm:$0xff] %v317
    // Predicated region
    $region22: #{_ffn_padded.1} parent=1 // pred_check
      _
    $region23: #{_ffn_padded.1} parent=1 // pred_check_branch
      %322 = sbr.rel (0) target = $region25
    $region24: #{_ffn_padded.1} parent=1 // pred_region
      %s324 = ssub.s32 256, 256
      %325 = vsyncadd [#allocation3], %s324
      %s327 = sshll.u32 [#allocation2], 4
      %s328 = int_to_ptr.vmem [resolvable:$true] %s327
      %330 = dma.vmem_to_hbm [thread:$0]  %s328, 256, %s5, [#allocation3]
    $region25: #{_ffn_padded.1} parent=1 // pred_fallthru
      _
    // Predicated region
    $region26: #{_ffn_padded.1} parent=1 // pred_check
      _
    $region27: #{_ffn_padded.1} parent=1 // pred_check_branch
      %332 = sbr.rel (0) target = $region29
    $region28: #{_ffn_padded.1} parent=1 // pred_region
      %333 = dma.done [#allocation3], 256
    $region29: #{_ffn_padded.1} parent=1 // pred_fallthru
      _
    %334 = vsyncpa [#allocation3], 1

</llo_original>
